<compile_context>
chip_gen: v7x
topology: tpu7x:2x2x1
jax: 0.10.0
libtpu: 0.0.40
codegen_flags: <defaults>
</compile_context>

<pallas_src>
import jax
import jax.numpy as jnp
from jax.experimental import pallas as pl
from jax.experimental.pallas import tpu as pltpu


_INV_SQRT2 = 0.7071067811865476


def _round_up(x, m):
    return ((x + m - 1) // m) * m


def _ffn_kernel(x_ref, w1_ref, b1_ref, w2_ref, b2_ref, o_ref, acc_ref):
    # x_ref : (tm, d_model)      w1_ref: (d_model, tff)   b1_ref: (1, tff)
    # w2_ref: (tff, d_model)     b2_ref: (1, d_model)
    # o_ref : (tm, d_model)      acc_ref: (tm, d_model) f32 scratch
    k = pl.program_id(1)

    @pl.when(k == 0)
    def _init():
        acc_ref[...] = jnp.zeros_like(acc_ref)

    # fc1 on this d_ff chunk (f32 accumulation on the MXU) + bias.
    h = jnp.dot(x_ref[...], w1_ref[...], preferred_element_type=jnp.float32)
    h = h + b1_ref[...].astype(jnp.float32)

    # Exact (erf) GELU in f32, matching nn.GELU() default.
    h = 0.5 * h * (1.0 + jax.lax.erf(h * jnp.float32(_INV_SQRT2)))

    # fc2 partial product for this chunk, accumulated in f32.
    acc_ref[...] += jnp.dot(h.astype(w2_ref.dtype), w2_ref[...],
                            preferred_element_type=jnp.float32)

    @pl.when(k == pl.num_programs(1) - 1)
    def _finalize():
        o_ref[...] = (acc_ref[...] + b2_ref[...].astype(jnp.float32)
                      ).astype(o_ref.dtype)


def _vmem_estimate(tm, tff, d_model, x_dtype, w_dtype, out_dtype):
    xi = jnp.dtype(x_dtype).itemsize
    wi = jnp.dtype(w_dtype).itemsize
    oi = jnp.dtype(out_dtype).itemsize
    b = 0
    b += 2 * tm * d_model * xi        # x tile (double buffered)
    b += 2 * tm * d_model * oi        # out tile (double buffered)
    b += 2 * d_model * tff * wi       # W1 chunk (streams over k)
    b += 2 * tff * d_model * wi       # W2 chunk (streams over k)
    b += 2 * tff * wi                 # b1 chunk
    b += 2 * d_model * wi             # b2
    b += tm * d_model * 4             # f32 accumulator scratch
    b += 2 * tm * tff * 4             # fc1/GELU f32 intermediate headroom
    return b


def poswise_ffn(x, w1, b1, w2, b2, *, tm=256, tff=512):
    """x: [batch, seq, d_model] -> [batch, seq, d_model].

    w1: [d_model, d_ff], b1: [d_ff], w2: [d_ff, d_model], b2: [d_model]
    (weights pre-transposed for right-multiplication, i.e. W.T of nn.Linear).
    For best TPU performance d_model and d_ff should be multiples of 128
    (lane-dense stores) and x/weights may be bf16 on v6e/v7x.
    """
    batch, seq, d_model = x.shape
    d_ff = w1.shape[1]
    M = batch * seq

    x2d = x.reshape(M, d_model)
    b1_2d = b1.reshape(1, d_ff)
    b2_2d = b2.reshape(1, d_model)

    # --- Row tile: large MXU-friendly tile, multiple of 8 sublanes. ---
    tm = max(8, min(int(tm), _round_up(M, 8)))
    tm = (tm // 8) * 8
    m_pad = _round_up(M, tm)
    if m_pad != M:
        x2d = jnp.pad(x2d, ((0, m_pad - M), (0, 0)))

    # --- d_ff chunk: multiple of 128 lanes; pad d_ff if needed (zeros are
    #     harmless: GELU(0)=0 and padded W2 rows are zero). ---
    tff = max(128, min(int(tff), _round_up(d_ff, 128)))
    tff = (tff // 128) * 128
    dff_pad = _round_up(d_ff, tff)
    if dff_pad != d_ff:
        w1 = jnp.pad(w1, ((0, 0), (0, dff_pad - d_ff)))
        b1_2d = jnp.pad(b1_2d, ((0, 0), (0, dff_pad - d_ff)))
        w2 = jnp.pad(w2, ((0, dff_pad - d_ff), (0, 0)))

    m_tiles = m_pad // tm
    k_tiles = dff_pad // tff

    vmem_bytes = _vmem_estimate(tm, tff, d_model, x2d.dtype, w1.dtype, x.dtype)
    vmem_limit = min(int(1.25 * vmem_bytes) + (4 << 20), 96 << 20)

    cost = pl.CostEstimate(
        flops=4 * M * d_model * d_ff,                       # two matmuls
        transcendentals=M * d_ff,                           # erf per hidden unit
        bytes_accessed=(x2d.size * x2d.dtype.itemsize
                        + (w1.size + w2.size + b1_2d.size + b2_2d.size)
                        * w1.dtype.itemsize
                        + M * d_model * x.dtype.itemsize),
    )

    out2d = pl.pallas_call(
        _ffn_kernel,
        out_shape=jax.ShapeDtypeStruct((m_pad, d_model), x.dtype),
        grid_spec=pltpu.PrefetchScalarGridSpec(
            num_scalar_prefetch=0,
            grid=(m_tiles, k_tiles),                        # reduction axis last
            in_specs=[
                pl.BlockSpec((tm, d_model), lambda i, k: (i, 0)),   # x rows
                pl.BlockSpec((d_model, tff), lambda i, k: (0, k)),  # W1 chunk
                pl.BlockSpec((1, tff), lambda i, k: (0, k)),        # b1 chunk
                pl.BlockSpec((tff, d_model), lambda i, k: (k, 0)),  # W2 chunk
                pl.BlockSpec((1, d_model), lambda i, k: (0, 0)),    # b2
            ],
            out_specs=pl.BlockSpec((tm, d_model), lambda i, k: (i, 0)),
            scratch_shapes=[pltpu.VMEM((tm, d_model), jnp.float32)],
        ),
        compiler_params=pltpu.CompilerParams(
            dimension_semantics=("parallel", "arbitrary"),
            vmem_limit_bytes=vmem_limit,
        ),
        cost_estimate=cost,
    )(x2d, w1, b1_2d, w2, b2_2d)

    return out2d[:M].reshape(batch, seq, d_model)


def _reference(x, w1, b1, w2, b2):
    hp = jax.lax.Precision.HIGHEST
    h = jnp.dot(x, w1, precision=hp) + b1
    h = jax.nn.gelu(h, approximate=False)
    return jnp.dot(h, w2, precision=hp) + b2


if __name__ == "__main__":
    # Small, lane-dense demo config (d_model, d_ff multiples of 128).
    batch, seq, d_model, d_ff = 2, 128, 128, 256

    key = jax.random.PRNGKey(0)
    kx, kw1, kb1, kw2, kb2 = jax.random.split(key, 5)

    x = jax.random.normal(kx, (batch, seq, d_model), dtype=jnp.float32)
    # Deterministic nn.Linear-style uniform init.
    lim1 = 1.0 / jnp.sqrt(jnp.float32(d_model))
    lim2 = 1.0 / jnp.sqrt(jnp.float32(d_ff))
    w1 = jax.random.uniform(kw1, (d_model, d_ff), jnp.float32, -lim1, lim1)
    b1 = jax.random.uniform(kb1, (d_ff,), jnp.float32, -lim1, lim1)
    w2 = jax.random.uniform(kw2, (d_ff, d_model), jnp.float32, -lim2, lim2)
    b2 = jax.random.uniform(kb2, (d_model,), jnp.float32, -lim2, lim2)

    # Default tiles: single (M, d_ff) tile here.
    out = jax.block_until_ready(poswise_ffn(x, w1, b1, w2, b2))
    # Smaller tiles: exercises the 2x2 grid (multiple row tiles + chunked
    # d_ff accumulation with pl.when init/finalize).
    out_tiled = jax.block_until_ready(
        poswise_ffn(x, w1, b1, w2, b2, tm=128, tff=128))

    ref = _reference(x, w1, b1, w2, b2)
    assert out.shape == (batch, seq, d_model)
    assert jnp.allclose(out, ref, atol=1e-4, rtol=1e-4), "mismatch (default tiles)"
    assert jnp.allclose(out_tiled, ref, atol=1e-4, rtol=1e-4), "mismatch (chunked)"

    print("KERNEL_OK")
</pallas_src>

<mosaic_0001>
module attributes {stable_mosaic.version = 11 : i64} {
  func.func @_ffn_kernel(%arg0: i32, %arg1: i32, %arg2: memref<256x128xf32, #tpu.memory_space<vmem>>, %arg3: memref<128x256xf32, #tpu.memory_space<vmem>>, %arg4: memref<1x256xf32, #tpu.memory_space<vmem>>, %arg5: memref<256x128xf32, #tpu.memory_space<vmem>>, %arg6: memref<1x128xf32, #tpu.memory_space<vmem>>, %arg7: memref<256x128xf32, #tpu.memory_space<vmem>>, %arg8: memref<256x128xf32, #tpu.memory_space<vmem>>) attributes {dimension_semantics = [#tpu.dimension_semantics<parallel>, #tpu.dimension_semantics<arbitrary>], iteration_bounds = array<i64: 1, 1>, scalar_prefetch = 0 : i64, scratch_operands = 1 : i64, tpu.core_type = #tpu.core_type<tc>, window_params = [{transform_indices = @transform_0, window_bounds = array<i64: 256, 128>}, {transform_indices = @transform_1, window_bounds = array<i64: 128, 256>}, {transform_indices = @transform_2, window_bounds = array<i64: 1, 256>}, {transform_indices = @transform_3, window_bounds = array<i64: 256, 128>}, {pipeline_mode = #tpu.pipeline_mode<synchronous>, transform_indices = @transform_4, window_bounds = array<i64: 1, 128>}, {transform_indices = @transform_5, window_bounds = array<i64: 256, 128>}]} {
    %c0_i32 = arith.constant 0 : i32
    %0 = arith.cmpi eq, %arg1, %c0_i32 : i32
    %1 = arith.extui %0 : i1 to i32
    %c0_i32_0 = arith.constant 0 : i32
    %2 = arith.cmpi ne, %1, %c0_i32_0 : i32
    scf.if %2 {
      %cst_18 = arith.constant 0.000000e+00 : f32
      %25 = vector.broadcast %cst_18 : f32 to vector<256x128xf32>
      %c0_19 = arith.constant 0 : index
      %c0_20 = arith.constant 0 : index
      %26 = vector.load %arg8[%c0_19, %c0_20] : memref<256x128xf32, #tpu.memory_space<vmem>>, vector<256x128xf32>
      tpu.vector_store %arg8[%c0_19, %c0_20], %25 {strides = array<i32>} : memref<256x128xf32, #tpu.memory_space<vmem>>, vector<256x128xf32>,
    } else {
    }
    %c0 = arith.constant 0 : index
    %c0_1 = arith.constant 0 : index
    %3 = vector.load %arg2[%c0, %c0_1] : memref<256x128xf32, #tpu.memory_space<vmem>>, vector<256x128xf32>
    %c0_2 = arith.constant 0 : index
    %c0_3 = arith.constant 0 : index
    %4 = vector.load %arg3[%c0_2, %c0_3] : memref<128x256xf32, #tpu.memory_space<vmem>>, vector<128x256xf32>
    %cst = arith.constant dense<0.000000e+00> : vector<256x256xf32>
    %5 = tpu.matmul %3, %4, %cst {dimension_numbers = #tpu.dot_dimension_numbers<[1], [0], [0], [1], [0, 0, 1, 1], [], []>} : vector<256x128xf32>, vector<128x256xf32>, vector<256x256xf32> -> vector<256x256xf32>
    %c0_4 = arith.constant 0 : index
    %c0_5 = arith.constant 0 : index
    %6 = vector.load %arg4[%c0_4, %c0_5] : memref<1x256xf32, #tpu.memory_space<vmem>>, vector<1x256xf32>
    %7 = vector.broadcast %6 : vector<1x256xf32> to vector<256x256xf32>
    %8 = arith.addf %5, %7 : vector<256x256xf32>
    %cst_6 = arith.constant 5.000000e-01 : f32
    %9 = vector.broadcast %cst_6 : f32 to vector<256x256xf32>
    %10 = arith.mulf %9, %8 : vector<256x256xf32>
    %cst_7 = arith.constant 0.707106769 : f32
    %11 = vector.broadcast %cst_7 : f32 to vector<256x256xf32>
    %12 = arith.mulf %8, %11 : vector<256x256xf32>
    %13 = math.erf %12 : vector<256x256xf32>
    %cst_8 = arith.constant 1.000000e+00 : f32
    %14 = vector.broadcast %cst_8 : f32 to vector<256x256xf32>
    %15 = arith.addf %14, %13 : vector<256x256xf32>
    %16 = arith.mulf %10, %15 : vector<256x256xf32>
    %c0_9 = arith.constant 0 : index
    %c0_10 = arith.constant 0 : index
    %17 = vector.load %arg8[%c0_9, %c0_10] : memref<256x128xf32, #tpu.memory_space<vmem>>, vector<256x128xf32>
    %c0_11 = arith.constant 0 : index
    %c0_12 = arith.constant 0 : index
    %18 = vector.load %arg5[%c0_11, %c0_12] : memref<256x128xf32, #tpu.memory_space<vmem>>, vector<256x128xf32>
    %cst_13 = arith.constant dense<0.000000e+00> : vector<256x128xf32>
    %19 = tpu.matmul %16, %18, %cst_13 {dimension_numbers = #tpu.dot_dimension_numbers<[1], [0], [0], [1], [0, 0, 1, 1], [], []>} : vector<256x256xf32>, vector<256x128xf32>, vector<256x128xf32> -> vector<256x128xf32>
    %20 = arith.addf %17, %19 : vector<256x128xf32>
    %c0_14 = arith.constant 0 : index
    %c0_15 = arith.constant 0 : index
    %21 = vector.load %arg8[%c0_14, %c0_15] : memref<256x128xf32, #tpu.memory_space<vmem>>, vector<256x128xf32>
    tpu.vector_store %arg8[%c0_14, %c0_15], %20 {strides = array<i32>} : memref<256x128xf32, #tpu.memory_space<vmem>>, vector<256x128xf32>,
    %c0_i32_16 = arith.constant 0 : i32
    %22 = arith.cmpi eq, %arg1, %c0_i32_16 : i32
    %23 = arith.extui %22 : i1 to i32
    %c0_i32_17 = arith.constant 0 : i32
    %24 = arith.cmpi ne, %23, %c0_i32_17 : i32
    scf.if %24 {
      %c0_18 = arith.constant 0 : index
      %c0_19 = arith.constant 0 : index
      %25 = vector.load %arg8[%c0_18, %c0_19] : memref<256x128xf32, #tpu.memory_space<vmem>>, vector<256x128xf32>
      %c0_20 = arith.constant 0 : index
      %c0_21 = arith.constant 0 : index
      %26 = vector.load %arg6[%c0_20, %c0_21] : memref<1x128xf32, #tpu.memory_space<vmem>>, vector<1x128xf32>
      %27 = vector.broadcast %26 : vector<1x128xf32> to vector<256x128xf32>
      %28 = arith.addf %25, %27 : vector<256x128xf32>
      %c0_22 = arith.constant 0 : index
      %c0_23 = arith.constant 0 : index
      %29 = vector.load %arg7[%c0_22, %c0_23] : memref<256x128xf32, #tpu.memory_space<vmem>>, vector<256x128xf32>
      tpu.vector_store %arg7[%c0_22, %c0_23], %28 {strides = array<i32>} : memref<256x128xf32, #tpu.memory_space<vmem>>, vector<256x128xf32>,
    } else {
    }
    return
  }
  func.func @transform_0(%arg0: i32, %arg1: i32) -> (i32, i32) {
    %c0_i32 = arith.constant 0 : i32
    %c0_i32_0 = arith.constant 0 : i32
    return %arg0, %c0_i32 : i32, i32
  }
  func.func @transform_1(%arg0: i32, %arg1: i32) -> (i32, i32) {
    %c0_i32 = arith.constant 0 : i32
    %c0_i32_0 = arith.constant 0 : i32
    return %c0_i32, %arg1 : i32, i32
  }
  func.func @transform_2(%arg0: i32, %arg1: i32) -> (i32, i32) {
    %c0_i32 = arith.constant 0 : i32
    %c0_i32_0 = arith.constant 0 : i32
    return %c0_i32, %arg1 : i32, i32
  }
  func.func @transform_3(%arg0: i32, %arg1: i32) -> (i32, i32) {
    %c0_i32 = arith.constant 0 : i32
    %c0_i32_0 = arith.constant 0 : i32
    return %arg1, %c0_i32 : i32, i32
  }
  func.func @transform_4(%arg0: i32, %arg1: i32) -> (i32, i32) {
    %c0_i32 = arith.constant 0 : i32
    %c0_i32_0 = arith.constant 0 : i32
    %c0_i32_1 = arith.constant 0 : i32
    return %c0_i32, %c0_i32_0 : i32, i32
  }
  func.func @transform_5(%arg0: i32, %arg1: i32) -> (i32, i32) {
    %c0_i32 = arith.constant 0 : i32
    %c0_i32_0 = arith.constant 0 : i32
    return %arg0, %c0_i32 : i32, i32
  }
}

</mosaic_0001>

<llo_original>
// kernel: tpu_custom_call.1
$region0: #{tpu_custom_call.1}
  #allocation0 [shape = 'u32[]', space=smem, size = 0x4, offset = 0x4, fixed_abs, tag = 'smem constant byte address 0x4 - core index']
  #allocation1 [shape = 'u32[144,128]{1,0:T(1,128)}', space=vmem, size = 0x12000, scoped, tag = 'internal scratch']
  #allocation2 [shape = 'f32[256,128]{1,0:T(8,128)}', space=vmem, size = 0x20000, scoped, tag = 'scratch operand']
  %s0 = inlined_call_operand.hbm [shape: f32[256,128], index: 0, kind: input, shape index: {}]
  %s1 = inlined_call_operand.hbm [shape: f32[128,256], index: 1, kind: input, shape index: {}]
  %s2 = inlined_call_operand.vmem [shape: f32[1,256], index: 2, kind: input, shape index: {}]
  %s3 = inlined_call_operand.hbm [shape: f32[256,128], index: 3, kind: input, shape index: {}]
  %s4 = inlined_call_operand.vmem [shape: f32[1,128], index: 4, kind: input, shape index: {}]
  %s5 = inlined_call_operand.hbm [shape: f32[256,128], index: 5, kind: output, shape index: {}]
  %s6 = sld [smem:[#allocation0]]
  $region50: #{tpu_custom_call.1} parent=0
    _
  %s8 = ssub.s32 1, %s6
  %s9 = scalar_select 0, %s8, %s6
  $region1: #{tpu_custom_call.1} parent=0
    #allocation3 [shape = 'u8[131072]{0}', space=vmem, size = 0x20000, scoped, tag = 'input window, operand 0, single buffered']
    #allocation4 [shape = 's32[1]{0}', space=sflag, size = 0x4, scoped, tag = 'scoped memory for tpu_custom_call.1']
    #allocation5 [shape = 's32[1]{0}', space=sflag, size = 0x4, scoped, tag = 'scoped memory for tpu_custom_call.1']
    #allocation6 [shape = 'u8[131072]{0}', space=vmem, size = 0x20000, scoped, tag = 'input window, operand 1, single buffered']
    #allocation7 [shape = 's32[1]{0}', space=sflag, size = 0x4, scoped, tag = 'scoped memory for tpu_custom_call.1']
    #allocation8 [shape = 'u8[131072]{0}', space=vmem, size = 0x20000, scoped, tag = 'input window, operand 3, single buffered']
    #allocation9 [shape = 'u8[131072]{0}', space=vmem, size = 0x20000, scoped, tag = 'output window, operand 0, single buffered']
    %10 = vsyncpa [#allocation4], 0
    %11 = vsyncpa [#allocation7], 0
    %12 = vsyncpa [#allocation5], 0
    // Predicated region
    $region2: #{tpu_custom_call.1} parent=1 // pred_check
      _
    $region3: #{tpu_custom_call.1} parent=1 // pred_check_branch
      %14 = sbr.rel (0) target = $region5
    $region4: #{tpu_custom_call.1} parent=1 // pred_region
      %s16 = ssub.s32 4096, 4096
      %17 = vsyncadd [#allocation4], %s16
      %s18 = sshll.u32 [#allocation3], 4
      %s19 = int_to_ptr.vmem [resolvable:$true] %s18
      %24 = dma.hbm_to_vmem [thread:$0]  %s0, 4096, %s19, [#allocation4], 128, 128, 8
    $region5: #{tpu_custom_call.1} parent=1 // pred_fallthru
      _
    // Predicated region
    $region6: #{tpu_custom_call.1} parent=1 // pred_check
      _
    $region7: #{tpu_custom_call.1} parent=1 // pred_check_branch
      %26 = sbr.rel (0) target = $region9
    $region8: #{tpu_custom_call.1} parent=1 // pred_region
      %s28 = ssub.s32 4096, 4096
      %29 = vsyncadd [#allocation7], %s28
      %s30 = sshll.u32 [#allocation6], 4
      %s31 = int_to_ptr.vmem [resolvable:$true] %s30
      %36 = dma.hbm_to_vmem [thread:$0]  %s1, 4096, %s31, [#allocation7], 256, 256, 16
    $region9: #{tpu_custom_call.1} parent=1 // pred_fallthru
      _
    // Predicated region
    $region10: #{tpu_custom_call.1} parent=1 // pred_check
      _
    $region11: #{tpu_custom_call.1} parent=1 // pred_check_branch
      %38 = sbr.rel (0) target = $region13
    $region12: #{tpu_custom_call.1} parent=1 // pred_region
      _
    $region13: #{tpu_custom_call.1} parent=1 // pred_fallthru
      _
    // Predicated region
    $region14: #{tpu_custom_call.1} parent=1 // pred_check
      _
    $region15: #{tpu_custom_call.1} parent=1 // pred_check_branch
      %40 = sbr.rel (0) target = $region17
    $region16: #{tpu_custom_call.1} parent=1 // pred_region
      %s42 = ssub.s32 4096, 4096
      %43 = vsyncadd [#allocation7], %s42
      %s44 = sshll.u32 [#allocation8], 4
      %s45 = int_to_ptr.vmem [resolvable:$true] %s44
      %50 = dma.hbm_to_vmem [thread:$0]  %s3, 4096, %s45, [#allocation7], 128, 128, 8
    $region17: #{tpu_custom_call.1} parent=1 // pred_fallthru
      _
    // Predicated region
    $region18: #{tpu_custom_call.1} parent=1 // pred_check
      _
    $region19: #{tpu_custom_call.1} parent=1 // pred_check_branch
      %52 = sbr.rel (0) target = $region21
    $region20: #{tpu_custom_call.1} parent=1 // pred_region
      _
    $region21: #{tpu_custom_call.1} parent=1 // pred_fallthru
      _
    // Predicated region
    $region22: #{tpu_custom_call.1} parent=1 // pred_check
      _
    $region23: #{tpu_custom_call.1} parent=1 // pred_check_branch
      %54 = sbr.rel (0) target = $region25
    $region24: #{tpu_custom_call.1} parent=1 // pred_region
      %55 = dma.done [#allocation4], 4096
    $region25: #{tpu_custom_call.1} parent=1 // pred_fallthru
      _
    // Predicated region
    $region26: #{tpu_custom_call.1} parent=1 // pred_check
      _
    $region27: #{tpu_custom_call.1} parent=1 // pred_check_branch
      %57 = sbr.rel (0) target = $region29
    $region28: #{tpu_custom_call.1} parent=1 // pred_region
      %58 = dma.done [#allocation7], 4096
    $region29: #{tpu_custom_call.1} parent=1 // pred_fallthru
      _
    // Predicated region
    $region30: #{tpu_custom_call.1} parent=1 // pred_check
      _
    $region31: #{tpu_custom_call.1} parent=1 // pred_check_branch
      %60 = sbr.rel (0) target = $region33
    $region32: #{tpu_custom_call.1} parent=1 // pred_region
      %61 = dma.done [#allocation7], 4096
    $region33: #{tpu_custom_call.1} parent=1 // pred_fallthru
      _
    %p62 = scmp.eq.s32.totalorder 0, 0
    // Predicated region
    $region34: #{tpu_custom_call.1} parent=1 // pred_check
      %p63 = pneg %p62
    $region35: #{tpu_custom_call.1} parent=1 // pred_check_branch
      %65 = sbr.rel (%p63) target = $region37
    $region36: #{tpu_custom_call.1} parent=1 // pred_region
      %66 = vst [vmem:[#allocation2] sm:$0xff] 0.0
      %67 = vst [vmem:[#allocation2 + $0x8] sm:$0xff] 0.0
      %68 = vst [vmem:[#allocation2 + $0x10] sm:$0xff] 0.0
      %69 = vst [vmem:[#allocation2 + $0x18] sm:$0xff] 0.0
      %70 = vst [vmem:[#allocation2 + $0x20] sm:$0xff] 0.0
      %71 = vst [vmem:[#allocation2 + $0x28] sm:$0xff] 0.0
      %72 = vst [vmem:[#allocation2 + $0x30] sm:$0xff] 0.0
      %73 = vst [vmem:[#allocation2 + $0x38] sm:$0xff] 0.0
      %74 = vst [vmem:[#allocation2 + $0x40] sm:$0xff] 0.0
      %75 = vst [vmem:[#allocation2 + $0x48] sm:$0xff] 0.0
      %76 = vst [vmem:[#allocation2 + $0x50] sm:$0xff] 0.0
      %77 = vst [vmem:[#allocation2 + $0x58] sm:$0xff] 0.0
      %78 = vst [vmem:[#allocation2 + $0x60] sm:$0xff] 0.0
      %79 = vst [vmem:[#allocation2 + $0x68] sm:$0xff] 0.0
      %80 = vst [vmem:[#allocation2 + $0x70] sm:$0xff] 0.0
      %81 = vst [vmem:[#allocation2 + $0x78] sm:$0xff] 0.0
      %82 = vst [vmem:[#allocation2 + $0x80] sm:$0xff] 0.0
      %83 = vst [vmem:[#allocation2 + $0x88] sm:$0xff] 0.0
      %84 = vst [vmem:[#allocation2 + $0x90] sm:$0xff] 0.0
      %85 = vst [vmem:[#allocation2 + $0x98] sm:$0xff] 0.0
      %86 = vst [vmem:[#allocation2 + $0xa0] sm:$0xff] 0.0
      %87 = vst [vmem:[#allocation2 + $0xa8] sm:$0xff] 0.0
      %88 = vst [vmem:[#allocation2 + $0xb0] sm:$0xff] 0.0
      %89 = vst [vmem:[#allocation2 + $0xb8] sm:$0xff] 0.0
      %90 = vst [vmem:[#allocation2 + $0xc0] sm:$0xff] 0.0
      %91 = vst [vmem:[#allocation2 + $0xc8] sm:$0xff] 0.0
      %92 = vst [vmem:[#allocation2 + $0xd0] sm:$0xff] 0.0
      %93 = vst [vmem:[#allocation2 + $0xd8] sm:$0xff] 0.0
      %94 = vst [vmem:[#allocation2 + $0xe0] sm:$0xff] 0.0
      %95 = vst [vmem:[#allocation2 + $0xe8] sm:$0xff] 0.0
      %96 = vst [vmem:[#allocation2 + $0xf0] sm:$0xff] 0.0
      %97 = vst [vmem:[#allocation2 + $0xf8] sm:$0xff] 0.0
    $region37: #{tpu_custom_call.1} parent=1 // pred_fallthru
      _
    %v98 = vld [vmem:[#allocation3] sm:$0xff]
    %v99 = vld [vmem:[#allocation3 + $0x8] sm:$0xff]
    %v100 = vld [vmem:[#allocation3 + $0x10] sm:$0xff]
    %v101 = vld [vmem:[#allocation3 + $0x18] sm:$0xff]
    %v102 = vld [vmem:[#allocation3 + $0x20] sm:$0xff]
    %v103 = vld [vmem:[#allocation3 + $0x28] sm:$0xff]
    %v104 = vld [vmem:[#allocation3 + $0x30] sm:$0xff]
    %v105 = vld [vmem:[#allocation3 + $0x38] sm:$0xff]
    %v106 = vld [vmem:[#allocation3 + $0x40] sm:$0xff]
    %v107 = vld [vmem:[#allocation3 + $0x48] sm:$0xff]
    %v108 = vld [vmem:[#allocation3 + $0x50] sm:$0xff]
    %v109 = vld [vmem:[#allocation3 + $0x58] sm:$0xff]
    %v110 = vld [vmem:[#allocation3 + $0x60] sm:$0xff]
    %v111 = vld [vmem:[#allocation3 + $0x68] sm:$0xff]
    %v112 = vld [vmem:[#allocation3 + $0x70] sm:$0xff]
    %v113 = vld [vmem:[#allocation3 + $0x78] sm:$0xff]
    %v114 = vld [vmem:[#allocation3 + $0x80] sm:$0xff]
    %v115 = vld [vmem:[#allocation3 + $0x88] sm:$0xff]
    %v116 = vld [vmem:[#allocation3 + $0x90] sm:$0xff]
    %v117 = vld [vmem:[#allocation3 + $0x98] sm:$0xff]
    %v118 = vld [vmem:[#allocation3 + $0xa0] sm:$0xff]
    %v119 = vld [vmem:[#allocation3 + $0xa8] sm:$0xff]
    %v120 = vld [vmem:[#allocation3 + $0xb0] sm:$0xff]
    %v121 = vld [vmem:[#allocation3 + $0xb8] sm:$0xff]
    %v122 = vld [vmem:[#allocation3 + $0xc0] sm:$0xff]
    %v123 = vld [vmem:[#allocation3 + $0xc8] sm:$0xff]
    %v124 = vld [vmem:[#allocation3 + $0xd0] sm:$0xff]
    %v125 = vld [vmem:[#allocation3 + $0xd8] sm:$0xff]
    %v126 = vld [vmem:[#allocation3 + $0xe0] sm:$0xff]
    %v127 = vld [vmem:[#allocation3 + $0xe8] sm:$0xff]
    %v128 = vld [vmem:[#allocation3 + $0xf0] sm:$0xff]
    %v129 = vld [vmem:[#allocation3 + $0xf8] sm:$0xff]
    %v130 = vld [vmem:[#allocation6] sm:$0xff]
    %v131 = vld [vmem:[#allocation6 + $0x8] sm:$0xff]
    %v132 = vld [vmem:[#allocation6 + $0x10] sm:$0xff]
    %v133 = vld [vmem:[#allocation6 + $0x18] sm:$0xff]
    %v134 = vld [vmem:[#allocation6 + $0x20] sm:$0xff]
    %v135 = vld [vmem:[#allocation6 + $0x28] sm:$0xff]
    %v136 = vld [vmem:[#allocation6 + $0x30] sm:$0xff]
    %v137 = vld [vmem:[#allocation6 + $0x38] sm:$0xff]
    %v138 = vld [vmem:[#allocation6 + $0x40] sm:$0xff]
    %v139 = vld [vmem:[#allocation6 + $0x48] sm:$0xff]
    %v140 = vld [vmem:[#allocation6 + $0x50] sm:$0xff]
    %v141 = vld [vmem:[#allocation6 + $0x58] sm:$0xff]
    %v142 = vld [vmem:[#allocation6 + $0x60] sm:$0xff]
    %v143 = vld [vmem:[#allocation6 + $0x68] sm:$0xff]
    %v144 = vld [vmem:[#allocation6 + $0x70] sm:$0xff]
    %v145 = vld [vmem:[#allocation6 + $0x78] sm:$0xff]
    %v146 = vld [vmem:[#allocation6 + $0x80] sm:$0xff]
    %v147 = vld [vmem:[#allocation6 + $0x88] sm:$0xff]
    %v148 = vld [vmem:[#allocation6 + $0x90] sm:$0xff]
    %v149 = vld [vmem:[#allocation6 + $0x98] sm:$0xff]
    %v150 = vld [vmem:[#allocation6 + $0xa0] sm:$0xff]
    %v151 = vld [vmem:[#allocation6 + $0xa8] sm:$0xff]
    %v152 = vld [vmem:[#allocation6 + $0xb0] sm:$0xff]
    %v153 = vld [vmem:[#allocation6 + $0xb8] sm:$0xff]
    %v154 = vld [vmem:[#allocation6 + $0xc0] sm:$0xff]
    %v155 = vld [vmem:[#allocation6 + $0xc8] sm:$0xff]
    %v156 = vld [vmem:[#allocation6 + $0xd0] sm:$0xff]
    %v157 = vld [vmem:[#allocation6 + $0xd8] sm:$0xff]
    %v158 = vld [vmem:[#allocation6 + $0xe0] sm:$0xff]
    %v159 = vld [vmem:[#allocation6 + $0xe8] sm:$0xff]
    %v160 = vld [vmem:[#allocation6 + $0xf0] sm:$0xff]
    %v161 = vld [vmem:[#allocation6 + $0xf8] sm:$0xff]
    %v162 = vld [vmem:[%s2] sm:$0x3]
    %v164 = vlaneseq
    %v165 = vshrl.u32 %v164, 7
    %v166 = vsub.s32 0, %v165
    %v167 = vrot.slane %v162, %v166
    %v168 = vlaneseq
    %v169 = vshrl.u32 %v168, 7
    %v170 = vsub.s32 1, %v169
    %v171 = vrot.slane %v162, %v170
    %174 = vmatprep.subr.mxu0 %v131
    %175 = vmatpush1.msra.mxu0 %v130
    %176 = vmatprep.subr.mxu0 %v133
    %177 = vmatpush1.msra.mxu0 %v132
    %178 = vmatprep.subr.mxu0 %v135
    %179 = vmatpush1.msra.mxu0 %v134
    %180 = vmatprep.subr.mxu0 %v137
    %181 = vmatpush1.msra.mxu0 %v136
    %182 = vmatprep.subr.mxu0 %v139
    %183 = vmatpush1.msra.mxu0 %v138
    %184 = vmatprep.subr.mxu0 %v141
    %185 = vmatpush1.msra.mxu0 %v140
    %186 = vmatprep.subr.mxu0 %v143
    %187 = vmatpush1.msra.mxu0 %v142
    %188 = vmatprep.subr.mxu0 %v145
    %189 = vmatpush1.msra.mxu0 %v144
    %190 = vmatprep.subr.mxu0 %v147
    %191 = vmatpush1.msra.mxu0 %v146
    %192 = vmatprep.subr.mxu0 %v149
    %193 = vmatpush1.msra.mxu0 %v148
    %194 = vmatprep.subr.mxu0 %v151
    %195 = vmatpush1.msra.mxu0 %v150
    %196 = vmatprep.subr.mxu0 %v153
    %197 = vmatpush1.msra.mxu0 %v152
    %198 = vmatprep.subr.mxu0 %v155
    %199 = vmatpush1.msra.mxu0 %v154
    %200 = vmatprep.subr.mxu0 %v157
    %201 = vmatpush1.msra.mxu0 %v156
    %202 = vmatprep.subr.mxu0 %v159
    %203 = vmatpush1.msra.mxu0 %v158
    %204 = vmatprep.subr.mxu0 %v161
    %205 = vmatpush1.msra.mxu0 %v160
    %206 = vmatprep.subr.mxu0 0.0
    %207 = vmatpush1.msra.mxu0 0.0
    %208 = vmatprep.subr.mxu0 0.0
    %209 = vmatpush1.msra.mxu0 0.0
    %210 = vmatprep.subr.mxu0 0.0
    %211 = vmatpush1.msra.mxu0 0.0
    %212 = vmatprep.subr.mxu0 0.0
    %213 = vmatpush1.msra.mxu0 0.0
    %214 = vmatprep.subr.mxu0 0.0
    %215 = vmatpush1.msra.mxu0 0.0
    %216 = vmatprep.subr.mxu0 0.0
    %217 = vmatpush1.msra.mxu0 0.0
    %218 = vmatprep.subr.mxu0 0.0
    %219 = vmatpush1.msra.mxu0 0.0
    %220 = vmatprep.subr.mxu0 0.0
    %221 = vmatpush1.msra.mxu0 0.0
    %222 = vmatprep.subr.mxu0 0.0
    %223 = vmatpush1.msra.mxu0 0.0
    %224 = vmatprep.subr.mxu0 0.0
    %225 = vmatpush1.msra.mxu0 0.0
    %226 = vmatprep.subr.mxu0 0.0
    %227 = vmatpush1.msra.mxu0 0.0
    %228 = vmatprep.subr.mxu0 0.0
    %229 = vmatpush1.msra.mxu0 0.0
    %230 = vmatprep.subr.mxu0 0.0
    %231 = vmatpush1.msra.mxu0 0.0
    %232 = vmatprep.subr.mxu0 0.0
    %233 = vmatpush1.msra.mxu0 0.0
    %234 = vmatprep.subr.mxu0 0.0
    %235 = vmatpush1.msra.mxu0 0.0
    %236 = vmatprep.subr.mxu0 0.0
    %237 = vmatpush1.msra.mxu0 0.0
    %238 = vmatprep.mubr.f32.mxu0 0.0
    %239 = vmatmul.mubr.f32.gmra.mrb[0].mxu0 %v98
    %v240 = vpop.f32.mrb[0].mxu0
    %v241 = vadd.f32 %v167, %v240
    %v242 = vpop.f32.mrb[0].mxu0
    %v243 = vadd.f32 %v171, %v242
    %244 = vmatprep.mubr.f32.mxu0 0.0
    %245 = vmatmul.mubr.f32.gmra.mrb[0].mxu0 %v99
    %v246 = vpop.f32.mrb[0].mxu0
    %v247 = vadd.f32 %v167, %v246
    %v248 = vpop.f32.mrb[0].mxu0
    %v249 = vadd.f32 %v171, %v248
    %250 = vmatprep.mubr.f32.mxu0 0.0
    %251 = vmatmul.mubr.f32.gmra.mrb[0].mxu0 %v100
    %v252 = vpop.f32.mrb[0].mxu0
    %v253 = vadd.f32 %v167, %v252
    %v254 = vpop.f32.mrb[0].mxu0
    %v255 = vadd.f32 %v171, %v254
    %256 = vmatprep.mubr.f32.mxu0 0.0
    %257 = vmatmul.mubr.f32.gmra.mrb[0].mxu0 %v101
    %v258 = vpop.f32.mrb[0].mxu0
    %v259 = vadd.f32 %v167, %v258
    %v260 = vpop.f32.mrb[0].mxu0
    %v261 = vadd.f32 %v171, %v260
    %262 = vmatprep.mubr.f32.mxu0 0.0
    %263 = vmatmul.mubr.f32.gmra.mrb[0].mxu0 %v102
    %v264 = vpop.f32.mrb[0].mxu0
    %v265 = vadd.f32 %v167, %v264
    %v266 = vpop.f32.mrb[0].mxu0
    %v267 = vadd.f32 %v171, %v266
    %268 = vmatprep.mubr.f32.mxu0 0.0
    %269 = vmatmul.mubr.f32.gmra.mrb[0].mxu0 %v103
    %v270 = vpop.f32.mrb[0].mxu0
    %v271 = vadd.f32 %v167, %v270
    %v272 = vpop.f32.mrb[0].mxu0
    %v273 = vadd.f32 %v171, %v272
    %274 = vmatprep.mubr.f32.mxu0 0.0
    %275 = vmatmul.mubr.f32.gmra.mrb[0].mxu0 %v104
    %v276 = vpop.f32.mrb[0].mxu0
    %v277 = vadd.f32 %v167, %v276
    %v278 = vpop.f32.mrb[0].mxu0
    %v279 = vadd.f32 %v171, %v278
    %280 = vmatprep.mubr.f32.mxu0 0.0
    %281 = vmatmul.mubr.f32.gmra.mrb[0].mxu0 %v105
    %v282 = vpop.f32.mrb[0].mxu0
    %v283 = vadd.f32 %v167, %v282
    %v284 = vpop.f32.mrb[0].mxu0
    %v285 = vadd.f32 %v171, %v284
    %286 = vmatprep.mubr.f32.mxu0 0.0
    %287 = vmatmul.mubr.f32.gmra.mrb[0].mxu0 %v106
    %v288 = vpop.f32.mrb[0].mxu0
    %v289 = vadd.f32 %v167, %v288
    %v290 = vpop.f32.mrb[0].mxu0
    %v291 = vadd.f32 %v171, %v290
    %292 = vmatprep.mubr.f32.mxu0 0.0
    %293 = vmatmul.mubr.f32.gmra.mrb[0].mxu0 %v107
    %v294 = vpop.f32.mrb[0].mxu0
    %v295 = vadd.f32 %v167, %v294
    %v296 = vpop.f32.mrb[0].mxu0
    %v297 = vadd.f32 %v171, %v296
    %298 = vmatprep.mubr.f32.mxu0 0.0
    %299 = vmatmul.mubr.f32.gmra.mrb[0].mxu0 %v108
    %v300 = vpop.f32.mrb[0].mxu0
    %v301 = vadd.f32 %v167, %v300
    %v302 = vpop.f32.mrb[0].mxu0
    %v303 = vadd.f32 %v171, %v302
    %304 = vmatprep.mubr.f32.mxu0 0.0
    %305 = vmatmul.mubr.f32.gmra.mrb[0].mxu0 %v109
    %v306 = vpop.f32.mrb[0].mxu0
    %v307 = vadd.f32 %v167, %v306
    %v308 = vpop.f32.mrb[0].mxu0
    %v309 = vadd.f32 %v171, %v308
    %310 = vmatprep.mubr.f32.mxu0 0.0
    %311 = vmatmul.mubr.f32.gmra.mrb[0].mxu0 %v110
    %v312 = vpop.f32.mrb[0].mxu0
    %v313 = vadd.f32 %v167, %v312
    %v314 = vpop.f32.mrb[0].mxu0
    %v315 = vadd.f32 %v171, %v314
    %316 = vmatprep.mubr.f32.mxu0 0.0
    %317 = vmatmul.mubr.f32.gmra.mrb[0].mxu0 %v111
    %v318 = vpop.f32.mrb[0].mxu0
    %v319 = vadd.f32 %v167, %v318
    %v320 = vpop.f32.mrb[0].mxu0
    %v321 = vadd.f32 %v171, %v320
    %322 = vmatprep.mubr.f32.mxu0 0.0
    %323 = vmatmul.mubr.f32.gmra.mrb[0].mxu0 %v112
    %v324 = vpop.f32.mrb[0].mxu0
    %v325 = vadd.f32 %v167, %v324
    %v326 = vpop.f32.mrb[0].mxu0
    %v327 = vadd.f32 %v171, %v326
    %328 = vmatprep.mubr.f32.mxu0 0.0
    %329 = vmatmul.mubr.f32.gmra.mrb[0].mxu0 %v113
    %v330 = vpop.f32.mrb[0].mxu0
    %v331 = vadd.f32 %v167, %v330
    %v332 = vpop.f32.mrb[0].mxu0
    %v333 = vadd.f32 %v171, %v332
    %334 = vmatprep.mubr.f32.mxu0 0.0
    %335 = vmatmul.mubr.f32.gmra.mrb[0].mxu0 %v114
    %v336 = vpop.f32.mrb[0].mxu0
    %v337 = vadd.f32 %v167, %v336
    %v338 = vpop.f32.mrb[0].mxu0
    %v339 = vadd.f32 %v171, %v338
    %340 = vmatprep.mubr.f32.mxu0 0.0
    %341 = vmatmul.mubr.f32.gmra.mrb[0].mxu0 %v115
    %v342 = vpop.f32.mrb[0].mxu0
    %v343 = vadd.f32 %v167, %v342
    %v344 = vpop.f32.mrb[0].mxu0
    %v345 = vadd.f32 %v171, %v344
    %346 = vmatprep.mubr.f32.mxu0 0.0
    %347 = vmatmul.mubr.f32.gmra.mrb[0].mxu0 %v116
    %v348 = vpop.f32.mrb[0].mxu0
    %v349 = vadd.f32 %v167, %v348
    %v350 = vpop.f32.mrb[0].mxu0
    %v351 = vadd.f32 %v171, %v350
    %352 = vmatprep.mubr.f32.mxu0 0.0
    %353 = vmatmul.mubr.f32.gmra.mrb[0].mxu0 %v117
    %v354 = vpop.f32.mrb[0].mxu0
    %v355 = vadd.f32 %v167, %v354
    %v356 = vpop.f32.mrb[0].mxu0
    %v357 = vadd.f32 %v171, %v356
    %358 = vmatprep.mubr.f32.mxu0 0.0
    %359 = vmatmul.mubr.f32.gmra.mrb[0].mxu0 %v118
    %v360 = vpop.f32.mrb[0].mxu0
    %v361 = vadd.f32 %v167, %v360
    %v362 = vpop.f32.mrb[0].mxu0
    %v363 = vadd.f32 %v171, %v362
    %364 = vmatprep.mubr.f32.mxu0 0.0
    %365 = vmatmul.mubr.f32.gmra.mrb[0].mxu0 %v119
    %v366 = vpop.f32.mrb[0].mxu0
    %v367 = vadd.f32 %v167, %v366
    %v368 = vpop.f32.mrb[0].mxu0
    %v369 = vadd.f32 %v171, %v368
    %370 = vmatprep.mubr.f32.mxu0 0.0
    %371 = vmatmul.mubr.f32.gmra.mrb[0].mxu0 %v120
    %v372 = vpop.f32.mrb[0].mxu0
    %v373 = vadd.f32 %v167, %v372
    %v374 = vpop.f32.mrb[0].mxu0
    %v375 = vadd.f32 %v171, %v374
    %376 = vmatprep.mubr.f32.mxu0 0.0
    %377 = vmatmul.mubr.f32.gmra.mrb[0].mxu0 %v121
    %v378 = vpop.f32.mrb[0].mxu0
    %v379 = vadd.f32 %v167, %v378
    %v380 = vpop.f32.mrb[0].mxu0
    %v381 = vadd.f32 %v171, %v380
    %382 = vmatprep.mubr.f32.mxu0 0.0
    %383 = vmatmul.mubr.f32.gmra.mrb[0].mxu0 %v122
    %v384 = vpop.f32.mrb[0].mxu0
    %v385 = vadd.f32 %v167, %v384
    %v386 = vpop.f32.mrb[0].mxu0
    %v387 = vadd.f32 %v171, %v386
    %388 = vmatprep.mubr.f32.mxu0 0.0
    %389 = vmatmul.mubr.f32.gmra.mrb[0].mxu0 %v123
    %v390 = vpop.f32.mrb[0].mxu0
    %v391 = vadd.f32 %v167, %v390
    %v392 = vpop.f32.mrb[0].mxu0
    %v393 = vadd.f32 %v171, %v392
    %394 = vmatprep.mubr.f32.mxu0 0.0
    %395 = vmatmul.mubr.f32.gmra.mrb[0].mxu0 %v124
    %v396 = vpop.f32.mrb[0].mxu0
    %v397 = vadd.f32 %v167, %v396
    %v398 = vpop.f32.mrb[0].mxu0
    %v399 = vadd.f32 %v171, %v398
    %400 = vmatprep.mubr.f32.mxu0 0.0
    %401 = vmatmul.mubr.f32.gmra.mrb[0].mxu0 %v125
    %v402 = vpop.f32.mrb[0].mxu0
    %v403 = vadd.f32 %v167, %v402
    %v404 = vpop.f32.mrb[0].mxu0
    %v405 = vadd.f32 %v171, %v404
    %406 = vmatprep.mubr.f32.mxu0 0.0
    %407 = vmatmul.mubr.f32.gmra.mrb[0].mxu0 %v126
    %v408 = vpop.f32.mrb[0].mxu0
    %v409 = vadd.f32 %v167, %v408
    %v410 = vpop.f32.mrb[0].mxu0
    %v411 = vadd.f32 %v171, %v410
    %412 = vmatprep.mubr.f32.mxu0 0.0
    %413 = vmatmul.mubr.f32.gmra.mrb[0].mxu0 %v127
    %v414 = vpop.f32.mrb[0].mxu0
    %v415 = vadd.f32 %v167, %v414
    %v416 = vpop.f32.mrb[0].mxu0
    %v417 = vadd.f32 %v171, %v416
    %418 = vmatprep.mubr.f32.mxu0 0.0
    %419 = vmatmul.mubr.f32.gmra.mrb[0].mxu0 %v128
    %v420 = vpop.f32.mrb[0].mxu0
    %v421 = vadd.f32 %v167, %v420
    %v422 = vpop.f32.mrb[0].mxu0
    %v423 = vadd.f32 %v171, %v422
    %424 = vmatprep.mubr.f32.mxu0 0.0
    %425 = vmatmul.mubr.f32.gmra.mrb[0].mxu0 %v129
    %v426 = vpop.f32.mrb[0].mxu0
    %v427 = vadd.f32 %v167, %v426
    %v428 = vpop.f32.mrb[0].mxu0
    %v429 = vadd.f32 %v171, %v428
    %430 = vdwg.mxu0
    %v431 = vmul.f32 %v241, 0.5
    %v432 = vmul.f32 %v243, 0.5
    %v433 = vmul.f32 %v247, 0.5
    %v434 = vmul.f32 %v249, 0.5
    %v435 = vmul.f32 %v253, 0.5
    %v436 = vmul.f32 %v255, 0.5
    %v437 = vmul.f32 %v259, 0.5
    %v438 = vmul.f32 %v261, 0.5
    %v439 = vmul.f32 %v265, 0.5
    %v440 = vmul.f32 %v267, 0.5
    %v441 = vmul.f32 %v271, 0.5
    %v442 = vmul.f32 %v273, 0.5
    %v443 = vmul.f32 %v277, 0.5
    %v444 = vmul.f32 %v279, 0.5
    %v445 = vmul.f32 %v283, 0.5
    %v446 = vmul.f32 %v285, 0.5
    %v447 = vmul.f32 %v289, 0.5
    %v448 = vmul.f32 %v291, 0.5
    %v449 = vmul.f32 %v295, 0.5
    %v450 = vmul.f32 %v297, 0.5
    %v451 = vmul.f32 %v301, 0.5
    %v452 = vmul.f32 %v303, 0.5
    %v453 = vmul.f32 %v307, 0.5
    %v454 = vmul.f32 %v309, 0.5
    %v455 = vmul.f32 %v313, 0.5
    %v456 = vmul.f32 %v315, 0.5
    %v457 = vmul.f32 %v319, 0.5
    %v458 = vmul.f32 %v321, 0.5
    %v459 = vmul.f32 %v325, 0.5
    %v460 = vmul.f32 %v327, 0.5
    %v461 = vmul.f32 %v331, 0.5
    %v462 = vmul.f32 %v333, 0.5
    %v463 = vmul.f32 %v337, 0.5
    %v464 = vmul.f32 %v339, 0.5
    %v465 = vmul.f32 %v343, 0.5
    %v466 = vmul.f32 %v345, 0.5
    %v467 = vmul.f32 %v349, 0.5
    %v468 = vmul.f32 %v351, 0.5
    %v469 = vmul.f32 %v355, 0.5
    %v470 = vmul.f32 %v357, 0.5
    %v471 = vmul.f32 %v361, 0.5
    %v472 = vmul.f32 %v363, 0.5
    %v473 = vmul.f32 %v367, 0.5
    %v474 = vmul.f32 %v369, 0.5
    %v475 = vmul.f32 %v373, 0.5
    %v476 = vmul.f32 %v375, 0.5
    %v477 = vmul.f32 %v379, 0.5
    %v478 = vmul.f32 %v381, 0.5
    %v479 = vmul.f32 %v385, 0.5
    %v480 = vmul.f32 %v387, 0.5
    %v481 = vmul.f32 %v391, 0.5
    %v482 = vmul.f32 %v393, 0.5
    %v483 = vmul.f32 %v397, 0.5
    %v484 = vmul.f32 %v399, 0.5
    %v485 = vmul.f32 %v403, 0.5
    %v486 = vmul.f32 %v405, 0.5
    %v487 = vmul.f32 %v409, 0.5
    %v488 = vmul.f32 %v411, 0.5
    %v489 = vmul.f32 %v415, 0.5
    %v490 = vmul.f32 %v417, 0.5
    %v491 = vmul.f32 %v421, 0.5
    %v492 = vmul.f32 %v423, 0.5
    %v493 = vmul.f32 %v427, 0.5
    %v494 = vmul.f32 %v429, 0.5
    %v495 = vmul.f32 %v241, 0.70710677
    %v496 = vmul.f32 %v243, 0.70710677
    %v497 = vmul.f32 %v247, 0.70710677
    %v498 = vmul.f32 %v249, 0.70710677
    %v499 = vmul.f32 %v253, 0.70710677
    %v500 = vmul.f32 %v255, 0.70710677
    %v501 = vmul.f32 %v259, 0.70710677
    %v502 = vmul.f32 %v261, 0.70710677
    %v503 = vmul.f32 %v265, 0.70710677
    %v504 = vmul.f32 %v267, 0.70710677
    %v505 = vmul.f32 %v271, 0.70710677
    %v506 = vmul.f32 %v273, 0.70710677
    %v507 = vmul.f32 %v277, 0.70710677
    %v508 = vmul.f32 %v279, 0.70710677
    %v509 = vmul.f32 %v283, 0.70710677
    %v510 = vmul.f32 %v285, 0.70710677
    %v511 = vmul.f32 %v289, 0.70710677
    %v512 = vmul.f32 %v291, 0.70710677
    %v513 = vmul.f32 %v295, 0.70710677
    %v514 = vmul.f32 %v297, 0.70710677
    %v515 = vmul.f32 %v301, 0.70710677
    %v516 = vmul.f32 %v303, 0.70710677
    %v517 = vmul.f32 %v307, 0.70710677
    %v518 = vmul.f32 %v309, 0.70710677
    %v519 = vmul.f32 %v313, 0.70710677
    %v520 = vmul.f32 %v315, 0.70710677
    %v521 = vmul.f32 %v319, 0.70710677
    %v522 = vmul.f32 %v321, 0.70710677
    %v523 = vmul.f32 %v325, 0.70710677
    %v524 = vmul.f32 %v327, 0.70710677
    %v525 = vmul.f32 %v331, 0.70710677
    %v526 = vmul.f32 %v333, 0.70710677
    %v527 = vmul.f32 %v337, 0.70710677
    %v528 = vmul.f32 %v339, 0.70710677
    %v529 = vmul.f32 %v343, 0.70710677
    %v530 = vmul.f32 %v345, 0.70710677
    %v531 = vmul.f32 %v349, 0.70710677
    %v532 = vmul.f32 %v351, 0.70710677
    %v533 = vmul.f32 %v355, 0.70710677
    %v534 = vmul.f32 %v357, 0.70710677
    %v535 = vmul.f32 %v361, 0.70710677
    %v536 = vmul.f32 %v363, 0.70710677
    %v537 = vmul.f32 %v367, 0.70710677
    %v538 = vmul.f32 %v369, 0.70710677
    %v539 = vmul.f32 %v373, 0.70710677
    %v540 = vmul.f32 %v375, 0.70710677
    %v541 = vmul.f32 %v379, 0.70710677
    %v542 = vmul.f32 %v381, 0.70710677
    %v543 = vmul.f32 %v385, 0.70710677
    %v544 = vmul.f32 %v387, 0.70710677
    %v545 = vmul.f32 %v391, 0.70710677
    %v546 = vmul.f32 %v393, 0.70710677
    %v547 = vmul.f32 %v397, 0.70710677
    %v548 = vmul.f32 %v399, 0.70710677
    %v549 = vmul.f32 %v403, 0.70710677
    %v550 = vmul.f32 %v405, 0.70710677
    %v551 = vmul.f32 %v409, 0.70710677
    %v552 = vmul.f32 %v411, 0.70710677
    %v553 = vmul.f32 %v415, 0.70710677
    %v554 = vmul.f32 %v417, 0.70710677
    %v555 = vmul.f32 %v421, 0.70710677
    %v556 = vmul.f32 %v423, 0.70710677
    %v557 = vmul.f32 %v427, 0.70710677
    %v558 = vmul.f32 %v429, 0.70710677
    %v559 = verf.f32.pop %v495
    %v560 = verf.f32.pop %v496
    %v561 = verf.f32.pop %v497
    %v562 = verf.f32.pop %v498
    %v563 = verf.f32.pop %v499
    %v564 = verf.f32.pop %v500
    %v565 = verf.f32.pop %v501
    %v566 = verf.f32.pop %v502
    %v567 = verf.f32.pop %v503
    %v568 = verf.f32.pop %v504
    %v569 = verf.f32.pop %v505
    %v570 = verf.f32.pop %v506
    %v571 = verf.f32.pop %v507
    %v572 = verf.f32.pop %v508
    %v573 = verf.f32.pop %v509
    %v574 = verf.f32.pop %v510
    %v575 = verf.f32.pop %v511
    %v576 = verf.f32.pop %v512
    %v577 = verf.f32.pop %v513
    %v578 = verf.f32.pop %v514
    %v579 = verf.f32.pop %v515
    %v580 = verf.f32.pop %v516
    %v581 = verf.f32.pop %v517
    %v582 = verf.f32.pop %v518
    %v583 = verf.f32.pop %v519
    %v584 = verf.f32.pop %v520
    %v585 = verf.f32.pop %v521
    %v586 = verf.f32.pop %v522
    %v587 = verf.f32.pop %v523
    %v588 = verf.f32.pop %v524
    %v589 = verf.f32.pop %v525
    %v590 = verf.f32.pop %v526
    %v591 = verf.f32.pop %v527
    %v592 = verf.f32.pop %v528
    %v593 = verf.f32.pop %v529
    %v594 = verf.f32.pop %v530
    %v595 = verf.f32.pop %v531
    %v596 = verf.f32.pop %v532
    %v597 = verf.f32.pop %v533
    %v598 = verf.f32.pop %v534
    %v599 = verf.f32.pop %v535
    %v600 = verf.f32.pop %v536
    %v601 = verf.f32.pop %v537
    %v602 = verf.f32.pop %v538
    %v603 = verf.f32.pop %v539
    %v604 = verf.f32.pop %v540
    %v605 = verf.f32.pop %v541
    %v606 = verf.f32.pop %v542
    %v607 = verf.f32.pop %v543
    %v608 = verf.f32.pop %v544
    %v609 = verf.f32.pop %v545
    %v610 = verf.f32.pop %v546
    %v611 = verf.f32.pop %v547
    %v612 = verf.f32.pop %v548
    %v613 = verf.f32.pop %v549
    %v614 = verf.f32.pop %v550
    %v615 = verf.f32.pop %v551
    %v616 = verf.f32.pop %v552
    %v617 = verf.f32.pop %v553
    %v618 = verf.f32.pop %v554
    %v619 = verf.f32.pop %v555
    %v620 = verf.f32.pop %v556
    %v621 = verf.f32.pop %v557
    %v622 = verf.f32.pop %v558
    %v623 = vadd.f32 %v559, 1.0
    %v624 = vadd.f32 %v560, 1.0
    %v625 = vadd.f32 %v561, 1.0
    %v626 = vadd.f32 %v562, 1.0
    %v627 = vadd.f32 %v563, 1.0
    %v628 = vadd.f32 %v564, 1.0
    %v629 = vadd.f32 %v565, 1.0
    %v630 = vadd.f32 %v566, 1.0
    %v631 = vadd.f32 %v567, 1.0
    %v632 = vadd.f32 %v568, 1.0
    %v633 = vadd.f32 %v569, 1.0
    %v634 = vadd.f32 %v570, 1.0
    %v635 = vadd.f32 %v571, 1.0
    %v636 = vadd.f32 %v572, 1.0
    %v637 = vadd.f32 %v573, 1.0
    %v638 = vadd.f32 %v574, 1.0
    %v639 = vadd.f32 %v575, 1.0
    %v640 = vadd.f32 %v576, 1.0
    %v641 = vadd.f32 %v577, 1.0
    %v642 = vadd.f32 %v578, 1.0
    %v643 = vadd.f32 %v579, 1.0
    %v644 = vadd.f32 %v580, 1.0
    %v645 = vadd.f32 %v581, 1.0
    %v646 = vadd.f32 %v582, 1.0
    %v647 = vadd.f32 %v583, 1.0
    %v648 = vadd.f32 %v584, 1.0
    %v649 = vadd.f32 %v585, 1.0
    %v650 = vadd.f32 %v586, 1.0
    %v651 = vadd.f32 %v587, 1.0
    %v652 = vadd.f32 %v588, 1.0
    %v653 = vadd.f32 %v589, 1.0
    %v654 = vadd.f32 %v590, 1.0
    %v655 = vadd.f32 %v591, 1.0
    %v656 = vadd.f32 %v592, 1.0
    %v657 = vadd.f32 %v593, 1.0
    %v658 = vadd.f32 %v594, 1.0
    %v659 = vadd.f32 %v595, 1.0
    %v660 = vadd.f32 %v596, 1.0
    %v661 = vadd.f32 %v597, 1.0
    %v662 = vadd.f32 %v598, 1.0
    %v663 = vadd.f32 %v599, 1.0
    %v664 = vadd.f32 %v600, 1.0
    %v665 = vadd.f32 %v601, 1.0
    %v666 = vadd.f32 %v602, 1.0
    %v667 = vadd.f32 %v603, 1.0
    %v668 = vadd.f32 %v604, 1.0
    %v669 = vadd.f32 %v605, 1.0
    %v670 = vadd.f32 %v606, 1.0
    %v671 = vadd.f32 %v607, 1.0
    %v672 = vadd.f32 %v608, 1.0
    %v673 = vadd.f32 %v609, 1.0
    %v674 = vadd.f32 %v610, 1.0
    %v675 = vadd.f32 %v611, 1.0
    %v676 = vadd.f32 %v612, 1.0
    %v677 = vadd.f32 %v613, 1.0
    %v678 = vadd.f32 %v614, 1.0
    %v679 = vadd.f32 %v615, 1.0
    %v680 = vadd.f32 %v616, 1.0
    %v681 = vadd.f32 %v617, 1.0
    %v682 = vadd.f32 %v618, 1.0
    %v683 = vadd.f32 %v619, 1.0
    %v684 = vadd.f32 %v620, 1.0
    %v685 = vadd.f32 %v621, 1.0
    %v686 = vadd.f32 %v622, 1.0
    %v687 = vmul.f32 %v431, %v623
    %v688 = vmul.f32 %v432, %v624
    %v689 = vmul.f32 %v433, %v625
    %v690 = vmul.f32 %v434, %v626
    %v691 = vmul.f32 %v435, %v627
    %v692 = vmul.f32 %v436, %v628
    %v693 = vmul.f32 %v437, %v629
    %v694 = vmul.f32 %v438, %v630
    %v695 = vmul.f32 %v439, %v631
    %v696 = vmul.f32 %v440, %v632
    %v697 = vmul.f32 %v441, %v633
    %v698 = vmul.f32 %v442, %v634
    %v699 = vmul.f32 %v443, %v635
    %v700 = vmul.f32 %v444, %v636
    %v701 = vmul.f32 %v445, %v637
    %v702 = vmul.f32 %v446, %v638
    %v703 = vmul.f32 %v447, %v639
    %v704 = vmul.f32 %v448, %v640
    %v705 = vmul.f32 %v449, %v641
    %v706 = vmul.f32 %v450, %v642
    %v707 = vmul.f32 %v451, %v643
    %v708 = vmul.f32 %v452, %v644
    %v709 = vmul.f32 %v453, %v645
    %v710 = vmul.f32 %v454, %v646
    %v711 = vmul.f32 %v455, %v647
    %v712 = vmul.f32 %v456, %v648
    %v713 = vmul.f32 %v457, %v649
    %v714 = vmul.f32 %v458, %v650
    %v715 = vmul.f32 %v459, %v651
    %v716 = vmul.f32 %v460, %v652
    %v717 = vmul.f32 %v461, %v653
    %v718 = vmul.f32 %v462, %v654
    %v719 = vmul.f32 %v463, %v655
    %v720 = vmul.f32 %v464, %v656
    %v721 = vmul.f32 %v465, %v657
    %v722 = vmul.f32 %v466, %v658
    %v723 = vmul.f32 %v467, %v659
    %v724 = vmul.f32 %v468, %v660
    %v725 = vmul.f32 %v469, %v661
    %v726 = vmul.f32 %v470, %v662
    %v727 = vmul.f32 %v471, %v663
    %v728 = vmul.f32 %v472, %v664
    %v729 = vmul.f32 %v473, %v665
    %v730 = vmul.f32 %v474, %v666
    %v731 = vmul.f32 %v475, %v667
    %v732 = vmul.f32 %v476, %v668
    %v733 = vmul.f32 %v477, %v669
    %v734 = vmul.f32 %v478, %v670
    %v735 = vmul.f32 %v479, %v671
    %v736 = vmul.f32 %v480, %v672
    %v737 = vmul.f32 %v481, %v673
    %v738 = vmul.f32 %v482, %v674
    %v739 = vmul.f32 %v483, %v675
    %v740 = vmul.f32 %v484, %v676
    %v741 = vmul.f32 %v485, %v677
    %v742 = vmul.f32 %v486, %v678
    %v743 = vmul.f32 %v487, %v679
    %v744 = vmul.f32 %v488, %v680
    %v745 = vmul.f32 %v489, %v681
    %v746 = vmul.f32 %v490, %v682
    %v747 = vmul.f32 %v491, %v683
    %v748 = vmul.f32 %v492, %v684
    %v749 = vmul.f32 %v493, %v685
    %v750 = vmul.f32 %v494, %v686
    %v751 = vld [vmem:[#allocation2] sm:$0xff]
    %v752 = vld [vmem:[#allocation2 + $0x8] sm:$0xff]
    %v753 = vld [vmem:[#allocation2 + $0x10] sm:$0xff]
    %v754 = vld [vmem:[#allocation2 + $0x18] sm:$0xff]
    %v755 = vld [vmem:[#allocation2 + $0x20] sm:$0xff]
    %v756 = vld [vmem:[#allocation2 + $0x28] sm:$0xff]
    %v757 = vld [vmem:[#allocation2 + $0x30] sm:$0xff]
    %v758 = vld [vmem:[#allocation2 + $0x38] sm:$0xff]
    %v759 = vld [vmem:[#allocation2 + $0x40] sm:$0xff]
    %v760 = vld [vmem:[#allocation2 + $0x48] sm:$0xff]
    %v761 = vld [vmem:[#allocation2 + $0x50] sm:$0xff]
    %v762 = vld [vmem:[#allocation2 + $0x58] sm:$0xff]
    %v763 = vld [vmem:[#allocation2 + $0x60] sm:$0xff]
    %v764 = vld [vmem:[#allocation2 + $0x68] sm:$0xff]
    %v765 = vld [vmem:[#allocation2 + $0x70] sm:$0xff]
    %v766 = vld [vmem:[#allocation2 + $0x78] sm:$0xff]
    %v767 = vld [vmem:[#allocation2 + $0x80] sm:$0xff]
    %v768 = vld [vmem:[#allocation2 + $0x88] sm:$0xff]
    %v769 = vld [vmem:[#allocation2 + $0x90] sm:$0xff]
    %v770 = vld [vmem:[#allocation2 + $0x98] sm:$0xff]
    %v771 = vld [vmem:[#allocation2 + $0xa0] sm:$0xff]
    %v772 = vld [vmem:[#allocation2 + $0xa8] sm:$0xff]
    %v773 = vld [vmem:[#allocation2 + $0xb0] sm:$0xff]
    %v774 = vld [vmem:[#allocation2 + $0xb8] sm:$0xff]
    %v775 = vld [vmem:[#allocation2 + $0xc0] sm:$0xff]
    %v776 = vld [vmem:[#allocation2 + $0xc8] sm:$0xff]
    %v777 = vld [vmem:[#allocation2 + $0xd0] sm:$0xff]
    %v778 = vld [vmem:[#allocation2 + $0xd8] sm:$0xff]
    %v779 = vld [vmem:[#allocation2 + $0xe0] sm:$0xff]
    %v780 = vld [vmem:[#allocation2 + $0xe8] sm:$0xff]
    %v781 = vld [vmem:[#allocation2 + $0xf0] sm:$0xff]
    %v782 = vld [vmem:[#allocation2 + $0xf8] sm:$0xff]
    %v783 = vld [vmem:[#allocation8] sm:$0xff]
    %v784 = vld [vmem:[#allocation8 + $0x8] sm:$0xff]
    %v785 = vld [vmem:[#allocation8 + $0x10] sm:$0xff]
    %v786 = vld [vmem:[#allocation8 + $0x18] sm:$0xff]
    %v787 = vld [vmem:[#allocation8 + $0x20] sm:$0xff]
    %v788 = vld [vmem:[#allocation8 + $0x28] sm:$0xff]
    %v789 = vld [vmem:[#allocation8 + $0x30] sm:$0xff]
    %v790 = vld [vmem:[#allocation8 + $0x38] sm:$0xff]
    %v791 = vld [vmem:[#allocation8 + $0x40] sm:$0xff]
    %v792 = vld [vmem:[#allocation8 + $0x48] sm:$0xff]
    %v793 = vld [vmem:[#allocation8 + $0x50] sm:$0xff]
    %v794 = vld [vmem:[#allocation8 + $0x58] sm:$0xff]
    %v795 = vld [vmem:[#allocation8 + $0x60] sm:$0xff]
    %v796 = vld [vmem:[#allocation8 + $0x68] sm:$0xff]
    %v797 = vld [vmem:[#allocation8 + $0x70] sm:$0xff]
    %v798 = vld [vmem:[#allocation8 + $0x78] sm:$0xff]
    %v799 = vld [vmem:[#allocation8 + $0x80] sm:$0xff]
    %v800 = vld [vmem:[#allocation8 + $0x88] sm:$0xff]
    %v801 = vld [vmem:[#allocation8 + $0x90] sm:$0xff]
    %v802 = vld [vmem:[#allocation8 + $0x98] sm:$0xff]
    %v803 = vld [vmem:[#allocation8 + $0xa0] sm:$0xff]
    %v804 = vld [vmem:[#allocation8 + $0xa8] sm:$0xff]
    %v805 = vld [vmem:[#allocation8 + $0xb0] sm:$0xff]
    %v806 = vld [vmem:[#allocation8 + $0xb8] sm:$0xff]
    %v807 = vld [vmem:[#allocation8 + $0xc0] sm:$0xff]
    %v808 = vld [vmem:[#allocation8 + $0xc8] sm:$0xff]
    %v809 = vld [vmem:[#allocation8 + $0xd0] sm:$0xff]
    %v810 = vld [vmem:[#allocation8 + $0xd8] sm:$0xff]
    %v811 = vld [vmem:[#allocation8 + $0xe0] sm:$0xff]
    %v812 = vld [vmem:[#allocation8 + $0xe8] sm:$0xff]
    %v813 = vld [vmem:[#allocation8 + $0xf0] sm:$0xff]
    %v814 = vld [vmem:[#allocation8 + $0xf8] sm:$0xff]
    %815 = vmatprep.subr.mxu0 0.0
    %816 = vmatpush1.msra.mxu0 %v783
    %817 = vmatprep.subr.mxu0 0.0
    %818 = vmatpush1.msra.mxu0 %v784
    %819 = vmatprep.subr.mxu0 0.0
    %820 = vmatpush1.msra.mxu0 %v785
    %821 = vmatprep.subr.mxu0 0.0
    %822 = vmatpush1.msra.mxu0 %v786
    %823 = vmatprep.subr.mxu0 0.0
    %824 = vmatpush1.msra.mxu0 %v787
    %825 = vmatprep.subr.mxu0 0.0
    %826 = vmatpush1.msra.mxu0 %v788
    %827 = vmatprep.subr.mxu0 0.0
    %828 = vmatpush1.msra.mxu0 %v789
    %829 = vmatprep.subr.mxu0 0.0
    %830 = vmatpush1.msra.mxu0 %v790
    %831 = vmatprep.subr.mxu0 0.0
    %832 = vmatpush1.msra.mxu0 %v791
    %833 = vmatprep.subr.mxu0 0.0
    %834 = vmatpush1.msra.mxu0 %v792
    %835 = vmatprep.subr.mxu0 0.0
    %836 = vmatpush1.msra.mxu0 %v793
    %837 = vmatprep.subr.mxu0 0.0
    %838 = vmatpush1.msra.mxu0 %v794
    %839 = vmatprep.subr.mxu0 0.0
    %840 = vmatpush1.msra.mxu0 %v795
    %841 = vmatprep.subr.mxu0 0.0
    %842 = vmatpush1.msra.mxu0 %v796
    %843 = vmatprep.subr.mxu0 0.0
    %844 = vmatpush1.msra.mxu0 %v797
    %845 = vmatprep.subr.mxu0 0.0
    %846 = vmatpush1.msra.mxu0 %v798
    %847 = vmatprep.subr.mxu0 0.0
    %848 = vmatpush1.msra.mxu0 %v799
    %849 = vmatprep.subr.mxu0 0.0
    %850 = vmatpush1.msra.mxu0 %v800
    %851 = vmatprep.subr.mxu0 0.0
    %852 = vmatpush1.msra.mxu0 %v801
    %853 = vmatprep.subr.mxu0 0.0
    %854 = vmatpush1.msra.mxu0 %v802
    %855 = vmatprep.subr.mxu0 0.0
    %856 = vmatpush1.msra.mxu0 %v803
    %857 = vmatprep.subr.mxu0 0.0
    %858 = vmatpush1.msra.mxu0 %v804
    %859 = vmatprep.subr.mxu0 0.0
    %860 = vmatpush1.msra.mxu0 %v805
    %861 = vmatprep.subr.mxu0 0.0
    %862 = vmatpush1.msra.mxu0 %v806
    %863 = vmatprep.subr.mxu0 0.0
    %864 = vmatpush1.msra.mxu0 %v807
    %865 = vmatprep.subr.mxu0 0.0
    %866 = vmatpush1.msra.mxu0 %v808
    %867 = vmatprep.subr.mxu0 0.0
    %868 = vmatpush1.msra.mxu0 %v809
    %869 = vmatprep.subr.mxu0 0.0
    %870 = vmatpush1.msra.mxu0 %v810
    %871 = vmatprep.subr.mxu0 0.0
    %872 = vmatpush1.msra.mxu0 %v811
    %873 = vmatprep.subr.mxu0 0.0
    %874 = vmatpush1.msra.mxu0 %v812
    %875 = vmatprep.subr.mxu0 0.0
    %876 = vmatpush1.msra.mxu0 %v813
    %877 = vmatprep.subr.mxu0 0.0
    %878 = vmatpush1.msra.mxu0 %v814
    %879 = vmatprep.mubr.f32.mxu0 %v688
    %880 = vmatmul.mubr.f32.gmra.mrb[0].mxu0 %v687
    %v881 = vpop.f32.mrb[0].mxu0
    %v882 = vadd.f32 0.0, %v881
    %v883 = vpop.f32.mrb[0].mxu0
    %884 = vmatprep.mubr.f32.mxu0 %v690
    %885 = vmatmul.mubr.f32.gmra.mrb[0].mxu0 %v689
    %v886 = vpop.f32.mrb[0].mxu0
    %v887 = vadd.f32 0.0, %v886
    %v888 = vpop.f32.mrb[0].mxu0
    %889 = vmatprep.mubr.f32.mxu0 %v692
    %890 = vmatmul.mubr.f32.gmra.mrb[0].mxu0 %v691
    %v891 = vpop.f32.mrb[0].mxu0
    %v892 = vadd.f32 0.0, %v891
    %v893 = vpop.f32.mrb[0].mxu0
    %894 = vmatprep.mubr.f32.mxu0 %v694
    %895 = vmatmul.mubr.f32.gmra.mrb[0].mxu0 %v693
    %v896 = vpop.f32.mrb[0].mxu0
    %v897 = vadd.f32 0.0, %v896
    %v898 = vpop.f32.mrb[0].mxu0
    %899 = vmatprep.mubr.f32.mxu0 %v696
    %900 = vmatmul.mubr.f32.gmra.mrb[0].mxu0 %v695
    %v901 = vpop.f32.mrb[0].mxu0
    %v902 = vadd.f32 0.0, %v901
    %v903 = vpop.f32.mrb[0].mxu0
    %904 = vmatprep.mubr.f32.mxu0 %v698
    %905 = vmatmul.mubr.f32.gmra.mrb[0].mxu0 %v697
    %v906 = vpop.f32.mrb[0].mxu0
    %v907 = vadd.f32 0.0, %v906
    %v908 = vpop.f32.mrb[0].mxu0
    %909 = vmatprep.mubr.f32.mxu0 %v700
    %910 = vmatmul.mubr.f32.gmra.mrb[0].mxu0 %v699
    %v911 = vpop.f32.mrb[0].mxu0
    %v912 = vadd.f32 0.0, %v911
    %v913 = vpop.f32.mrb[0].mxu0
    %914 = vmatprep.mubr.f32.mxu0 %v702
    %915 = vmatmul.mubr.f32.gmra.mrb[0].mxu0 %v701
    %v916 = vpop.f32.mrb[0].mxu0
    %v917 = vadd.f32 0.0, %v916
    %v918 = vpop.f32.mrb[0].mxu0
    %919 = vmatprep.mubr.f32.mxu0 %v704
    %920 = vmatmul.mubr.f32.gmra.mrb[0].mxu0 %v703
    %v921 = vpop.f32.mrb[0].mxu0
    %v922 = vadd.f32 0.0, %v921
    %v923 = vpop.f32.mrb[0].mxu0
    %924 = vmatprep.mubr.f32.mxu0 %v706
    %925 = vmatmul.mubr.f32.gmra.mrb[0].mxu0 %v705
    %v926 = vpop.f32.mrb[0].mxu0
    %v927 = vadd.f32 0.0, %v926
    %v928 = vpop.f32.mrb[0].mxu0
    %929 = vmatprep.mubr.f32.mxu0 %v708
    %930 = vmatmul.mubr.f32.gmra.mrb[0].mxu0 %v707
    %v931 = vpop.f32.mrb[0].mxu0
    %v932 = vadd.f32 0.0, %v931
    %v933 = vpop.f32.mrb[0].mxu0
    %934 = vmatprep.mubr.f32.mxu0 %v710
    %935 = vmatmul.mubr.f32.gmra.mrb[0].mxu0 %v709
    %v936 = vpop.f32.mrb[0].mxu0
    %v937 = vadd.f32 0.0, %v936
    %v938 = vpop.f32.mrb[0].mxu0
    %939 = vmatprep.mubr.f32.mxu0 %v712
    %940 = vmatmul.mubr.f32.gmra.mrb[0].mxu0 %v711
    %v941 = vpop.f32.mrb[0].mxu0
    %v942 = vadd.f32 0.0, %v941
    %v943 = vpop.f32.mrb[0].mxu0
    %944 = vmatprep.mubr.f32.mxu0 %v714
    %945 = vmatmul.mubr.f32.gmra.mrb[0].mxu0 %v713
    %v946 = vpop.f32.mrb[0].mxu0
    %v947 = vadd.f32 0.0, %v946
    %v948 = vpop.f32.mrb[0].mxu0
    %949 = vmatprep.mubr.f32.mxu0 %v716
    %950 = vmatmul.mubr.f32.gmra.mrb[0].mxu0 %v715
    %v951 = vpop.f32.mrb[0].mxu0
    %v952 = vadd.f32 0.0, %v951
    %v953 = vpop.f32.mrb[0].mxu0
    %954 = vmatprep.mubr.f32.mxu0 %v718
    %955 = vmatmul.mubr.f32.gmra.mrb[0].mxu0 %v717
    %v956 = vpop.f32.mrb[0].mxu0
    %v957 = vadd.f32 0.0, %v956
    %v958 = vpop.f32.mrb[0].mxu0
    %959 = vmatprep.mubr.f32.mxu0 %v720
    %960 = vmatmul.mubr.f32.gmra.mrb[0].mxu0 %v719
    %v961 = vpop.f32.mrb[0].mxu0
    %v962 = vadd.f32 0.0, %v961
    %v963 = vpop.f32.mrb[0].mxu0
    %964 = vmatprep.mubr.f32.mxu0 %v722
    %965 = vmatmul.mubr.f32.gmra.mrb[0].mxu0 %v721
    %v966 = vpop.f32.mrb[0].mxu0
    %v967 = vadd.f32 0.0, %v966
    %v968 = vpop.f32.mrb[0].mxu0
    %969 = vmatprep.mubr.f32.mxu0 %v724
    %970 = vmatmul.mubr.f32.gmra.mrb[0].mxu0 %v723
    %v971 = vpop.f32.mrb[0].mxu0
    %v972 = vadd.f32 0.0, %v971
    %v973 = vpop.f32.mrb[0].mxu0
    %974 = vmatprep.mubr.f32.mxu0 %v726
    %975 = vmatmul.mubr.f32.gmra.mrb[0].mxu0 %v725
    %v976 = vpop.f32.mrb[0].mxu0
    %v977 = vadd.f32 0.0, %v976
    %v978 = vpop.f32.mrb[0].mxu0
    %979 = vmatprep.mubr.f32.mxu0 %v728
    %980 = vmatmul.mubr.f32.gmra.mrb[0].mxu0 %v727
    %v981 = vpop.f32.mrb[0].mxu0
    %v982 = vadd.f32 0.0, %v981
    %v983 = vpop.f32.mrb[0].mxu0
    %984 = vmatprep.mubr.f32.mxu0 %v730
    %985 = vmatmul.mubr.f32.gmra.mrb[0].mxu0 %v729
    %v986 = vpop.f32.mrb[0].mxu0
    %v987 = vadd.f32 0.0, %v986
    %v988 = vpop.f32.mrb[0].mxu0
    %989 = vmatprep.mubr.f32.mxu0 %v732
    %990 = vmatmul.mubr.f32.gmra.mrb[0].mxu0 %v731
    %v991 = vpop.f32.mrb[0].mxu0
    %v992 = vadd.f32 0.0, %v991
    %v993 = vpop.f32.mrb[0].mxu0
    %994 = vmatprep.mubr.f32.mxu0 %v734
    %995 = vmatmul.mubr.f32.gmra.mrb[0].mxu0 %v733
    %v996 = vpop.f32.mrb[0].mxu0
    %v997 = vadd.f32 0.0, %v996
    %v998 = vpop.f32.mrb[0].mxu0
    %999 = vmatprep.mubr.f32.mxu0 %v736
    %1000 = vmatmul.mubr.f32.gmra.mrb[0].mxu0 %v735
    %v1001 = vpop.f32.mrb[0].mxu0
    %v1002 = vadd.f32 0.0, %v1001
    %v1003 = vpop.f32.mrb[0].mxu0
    %1004 = vmatprep.mubr.f32.mxu0 %v738
    %1005 = vmatmul.mubr.f32.gmra.mrb[0].mxu0 %v737
    %v1006 = vpop.f32.mrb[0].mxu0
    %v1007 = vadd.f32 0.0, %v1006
    %v1008 = vpop.f32.mrb[0].mxu0
    %1009 = vmatprep.mubr.f32.mxu0 %v740
    %1010 = vmatmul.mubr.f32.gmra.mrb[0].mxu0 %v739
    %v1011 = vpop.f32.mrb[0].mxu0
    %v1012 = vadd.f32 0.0, %v1011
    %v1013 = vpop.f32.mrb[0].mxu0
    %1014 = vmatprep.mubr.f32.mxu0 %v742
    %1015 = vmatmul.mubr.f32.gmra.mrb[0].mxu0 %v741
    %v1016 = vpop.f32.mrb[0].mxu0
    %v1017 = vadd.f32 0.0, %v1016
    %v1018 = vpop.f32.mrb[0].mxu0
    %1019 = vmatprep.mubr.f32.mxu0 %v744
    %1020 = vmatmul.mubr.f32.gmra.mrb[0].mxu0 %v743
    %v1021 = vpop.f32.mrb[0].mxu0
    %v1022 = vadd.f32 0.0, %v1021
    %v1023 = vpop.f32.mrb[0].mxu0
    %1024 = vmatprep.mubr.f32.mxu0 %v746
    %1025 = vmatmul.mubr.f32.gmra.mrb[0].mxu0 %v745
    %v1026 = vpop.f32.mrb[0].mxu0
    %v1027 = vadd.f32 0.0, %v1026
    %v1028 = vpop.f32.mrb[0].mxu0
    %1029 = vmatprep.mubr.f32.mxu0 %v748
    %1030 = vmatmul.mubr.f32.gmra.mrb[0].mxu0 %v747
    %v1031 = vpop.f32.mrb[0].mxu0
    %v1032 = vadd.f32 0.0, %v1031
    %v1033 = vpop.f32.mrb[0].mxu0
    %1034 = vmatprep.mubr.f32.mxu0 %v750
    %1035 = vmatmul.mubr.f32.gmra.mrb[0].mxu0 %v749
    %v1036 = vpop.f32.mrb[0].mxu0
    %v1037 = vadd.f32 0.0, %v1036
    %v1038 = vpop.f32.mrb[0].mxu0
    %1039 = vdwg.mxu0
    %v1040 = vadd.f32 %v751, %v882
    %v1041 = vadd.f32 %v752, %v887
    %v1042 = vadd.f32 %v753, %v892
    %v1043 = vadd.f32 %v754, %v897
    %v1044 = vadd.f32 %v755, %v902
    %v1045 = vadd.f32 %v756, %v907
    %v1046 = vadd.f32 %v757, %v912
    %v1047 = vadd.f32 %v758, %v917
    %v1048 = vadd.f32 %v759, %v922
    %v1049 = vadd.f32 %v760, %v927
    %v1050 = vadd.f32 %v761, %v932
    %v1051 = vadd.f32 %v762, %v937
    %v1052 = vadd.f32 %v763, %v942
    %v1053 = vadd.f32 %v764, %v947
    %v1054 = vadd.f32 %v765, %v952
    %v1055 = vadd.f32 %v766, %v957
    %v1056 = vadd.f32 %v767, %v962
    %v1057 = vadd.f32 %v768, %v967
    %v1058 = vadd.f32 %v769, %v972
    %v1059 = vadd.f32 %v770, %v977
    %v1060 = vadd.f32 %v771, %v982
    %v1061 = vadd.f32 %v772, %v987
    %v1062 = vadd.f32 %v773, %v992
    %v1063 = vadd.f32 %v774, %v997
    %v1064 = vadd.f32 %v775, %v1002
    %v1065 = vadd.f32 %v776, %v1007
    %v1066 = vadd.f32 %v777, %v1012
    %v1067 = vadd.f32 %v778, %v1017
    %v1068 = vadd.f32 %v779, %v1022
    %v1069 = vadd.f32 %v780, %v1027
    %v1070 = vadd.f32 %v781, %v1032
    %v1071 = vadd.f32 %v782, %v1037
    %1072 = vst [vmem:[#allocation2] sm:$0xff] %v1040
    %1073 = vst [vmem:[#allocation2 + $0x8] sm:$0xff] %v1041
    %1074 = vst [vmem:[#allocation2 + $0x10] sm:$0xff] %v1042
    %1075 = vst [vmem:[#allocation2 + $0x18] sm:$0xff] %v1043
    %1076 = vst [vmem:[#allocation2 + $0x20] sm:$0xff] %v1044
    %1077 = vst [vmem:[#allocation2 + $0x28] sm:$0xff] %v1045
    %1078 = vst [vmem:[#allocation2 + $0x30] sm:$0xff] %v1046
    %1079 = vst [vmem:[#allocation2 + $0x38] sm:$0xff] %v1047
    %1080 = vst [vmem:[#allocation2 + $0x40] sm:$0xff] %v1048
    %1081 = vst [vmem:[#allocation2 + $0x48] sm:$0xff] %v1049
    %1082 = vst [vmem:[#allocation2 + $0x50] sm:$0xff] %v1050
    %1083 = vst [vmem:[#allocation2 + $0x58] sm:$0xff] %v1051
    %1084 = vst [vmem:[#allocation2 + $0x60] sm:$0xff] %v1052
    %1085 = vst [vmem:[#allocation2 + $0x68] sm:$0xff] %v1053
    %1086 = vst [vmem:[#allocation2 + $0x70] sm:$0xff] %v1054
    %1087 = vst [vmem:[#allocation2 + $0x78] sm:$0xff] %v1055
    %1088 = vst [vmem:[#allocation2 + $0x80] sm:$0xff] %v1056
    %1089 = vst [vmem:[#allocation2 + $0x88] sm:$0xff] %v1057
    %1090 = vst [vmem:[#allocation2 + $0x90] sm:$0xff] %v1058
    %1091 = vst [vmem:[#allocation2 + $0x98] sm:$0xff] %v1059
    %1092 = vst [vmem:[#allocation2 + $0xa0] sm:$0xff] %v1060
    %1093 = vst [vmem:[#allocation2 + $0xa8] sm:$0xff] %v1061
    %1094 = vst [vmem:[#allocation2 + $0xb0] sm:$0xff] %v1062
    %1095 = vst [vmem:[#allocation2 + $0xb8] sm:$0xff] %v1063
    %1096 = vst [vmem:[#allocation2 + $0xc0] sm:$0xff] %v1064
    %1097 = vst [vmem:[#allocation2 + $0xc8] sm:$0xff] %v1065
    %1098 = vst [vmem:[#allocation2 + $0xd0] sm:$0xff] %v1066
    %1099 = vst [vmem:[#allocation2 + $0xd8] sm:$0xff] %v1067
    %1100 = vst [vmem:[#allocation2 + $0xe0] sm:$0xff] %v1068
    %1101 = vst [vmem:[#allocation2 + $0xe8] sm:$0xff] %v1069
    %1102 = vst [vmem:[#allocation2 + $0xf0] sm:$0xff] %v1070
    %1103 = vst [vmem:[#allocation2 + $0xf8] sm:$0xff] %v1071
    // Predicated region
    $region38: #{tpu_custom_call.1} parent=1 // pred_check
      %p1104 = pneg %p62
    $region39: #{tpu_custom_call.1} parent=1 // pred_check_branch
      %1106 = sbr.rel (%p1104) target = $region41
    $region40: #{tpu_custom_call.1} parent=1 // pred_region
      %v1107 = vld [vmem:[#allocation2] sm:$0xff]
      %v1108 = vld [vmem:[#allocation2 + $0x8] sm:$0xff]
      %v1109 = vld [vmem:[#allocation2 + $0x10] sm:$0xff]
      %v1110 = vld [vmem:[#allocation2 + $0x18] sm:$0xff]
      %v1111 = vld [vmem:[#allocation2 + $0x20] sm:$0xff]
      %v1112 = vld [vmem:[#allocation2 + $0x28] sm:$0xff]
      %v1113 = vld [vmem:[#allocation2 + $0x30] sm:$0xff]
      %v1114 = vld [vmem:[#allocation2 + $0x38] sm:$0xff]
      %v1115 = vld [vmem:[#allocation2 + $0x40] sm:$0xff]
      %v1116 = vld [vmem:[#allocation2 + $0x48] sm:$0xff]
      %v1117 = vld [vmem:[#allocation2 + $0x50] sm:$0xff]
      %v1118 = vld [vmem:[#allocation2 + $0x58] sm:$0xff]
      %v1119 = vld [vmem:[#allocation2 + $0x60] sm:$0xff]
      %v1120 = vld [vmem:[#allocation2 + $0x68] sm:$0xff]
      %v1121 = vld [vmem:[#allocation2 + $0x70] sm:$0xff]
      %v1122 = vld [vmem:[#allocation2 + $0x78] sm:$0xff]
      %v1123 = vld [vmem:[#allocation2 + $0x80] sm:$0xff]
      %v1124 = vld [vmem:[#allocation2 + $0x88] sm:$0xff]
      %v1125 = vld [vmem:[#allocation2 + $0x90] sm:$0xff]
      %v1126 = vld [vmem:[#allocation2 + $0x98] sm:$0xff]
      %v1127 = vld [vmem:[#allocation2 + $0xa0] sm:$0xff]
      %v1128 = vld [vmem:[#allocation2 + $0xa8] sm:$0xff]
      %v1129 = vld [vmem:[#allocation2 + $0xb0] sm:$0xff]
      %v1130 = vld [vmem:[#allocation2 + $0xb8] sm:$0xff]
      %v1131 = vld [vmem:[#allocation2 + $0xc0] sm:$0xff]
      %v1132 = vld [vmem:[#allocation2 + $0xc8] sm:$0xff]
      %v1133 = vld [vmem:[#allocation2 + $0xd0] sm:$0xff]
      %v1134 = vld [vmem:[#allocation2 + $0xd8] sm:$0xff]
      %v1135 = vld [vmem:[#allocation2 + $0xe0] sm:$0xff]
      %v1136 = vld [vmem:[#allocation2 + $0xe8] sm:$0xff]
      %v1137 = vld [vmem:[#allocation2 + $0xf0] sm:$0xff]
      %v1138 = vld [vmem:[#allocation2 + $0xf8] sm:$0xff]
      %v1139 = vld [vmem:[%s4] sm:$0x1]
      %v1141 = vlaneseq
      %v1142 = vshrl.u32 %v1141, 7
      %v1143 = vsub.s32 0, %v1142
      %v1144 = vrot.slane %v1139, %v1143
      %v1146 = vadd.f32 %v1107, %v1144
      %v1147 = vadd.f32 %v1108, %v1144
      %v1148 = vadd.f32 %v1109, %v1144
      %v1149 = vadd.f32 %v1110, %v1144
      %v1150 = vadd.f32 %v1111, %v1144
      %v1151 = vadd.f32 %v1112, %v1144
      %v1152 = vadd.f32 %v1113, %v1144
      %v1153 = vadd.f32 %v1114, %v1144
      %v1154 = vadd.f32 %v1115, %v1144
      %v1155 = vadd.f32 %v1116, %v1144
      %v1156 = vadd.f32 %v1117, %v1144
      %v1157 = vadd.f32 %v1118, %v1144
      %v1158 = vadd.f32 %v1119, %v1144
      %v1159 = vadd.f32 %v1120, %v1144
      %v1160 = vadd.f32 %v1121, %v1144
      %v1161 = vadd.f32 %v1122, %v1144
      %v1162 = vadd.f32 %v1123, %v1144
      %v1163 = vadd.f32 %v1124, %v1144
      %v1164 = vadd.f32 %v1125, %v1144
      %v1165 = vadd.f32 %v1126, %v1144
      %v1166 = vadd.f32 %v1127, %v1144
      %v1167 = vadd.f32 %v1128, %v1144
      %v1168 = vadd.f32 %v1129, %v1144
      %v1169 = vadd.f32 %v1130, %v1144
      %v1170 = vadd.f32 %v1131, %v1144
      %v1171 = vadd.f32 %v1132, %v1144
      %v1172 = vadd.f32 %v1133, %v1144
      %v1173 = vadd.f32 %v1134, %v1144
      %v1174 = vadd.f32 %v1135, %v1144
      %v1175 = vadd.f32 %v1136, %v1144
      %v1176 = vadd.f32 %v1137, %v1144
      %v1177 = vadd.f32 %v1138, %v1144
      %1178 = vst [vmem:[#allocation9] sm:$0xff] %v1146
      %1179 = vst [vmem:[#allocation9 + $0x8] sm:$0xff] %v1147
      %1180 = vst [vmem:[#allocation9 + $0x10] sm:$0xff] %v1148
      %1181 = vst [vmem:[#allocation9 + $0x18] sm:$0xff] %v1149
      %1182 = vst [vmem:[#allocation9 + $0x20] sm:$0xff] %v1150
      %1183 = vst [vmem:[#allocation9 + $0x28] sm:$0xff] %v1151
      %1184 = vst [vmem:[#allocation9 + $0x30] sm:$0xff] %v1152
      %1185 = vst [vmem:[#allocation9 + $0x38] sm:$0xff] %v1153
      %1186 = vst [vmem:[#allocation9 + $0x40] sm:$0xff] %v1154
      %1187 = vst [vmem:[#allocation9 + $0x48] sm:$0xff] %v1155
      %1188 = vst [vmem:[#allocation9 + $0x50] sm:$0xff] %v1156
      %1189 = vst [vmem:[#allocation9 + $0x58] sm:$0xff] %v1157
      %1190 = vst [vmem:[#allocation9 + $0x60] sm:$0xff] %v1158
      %1191 = vst [vmem:[#allocation9 + $0x68] sm:$0xff] %v1159
      %1192 = vst [vmem:[#allocation9 + $0x70] sm:$0xff] %v1160
      %1193 = vst [vmem:[#allocation9 + $0x78] sm:$0xff] %v1161
      %1194 = vst [vmem:[#allocation9 + $0x80] sm:$0xff] %v1162
      %1195 = vst [vmem:[#allocation9 + $0x88] sm:$0xff] %v1163
      %1196 = vst [vmem:[#allocation9 + $0x90] sm:$0xff] %v1164
      %1197 = vst [vmem:[#allocation9 + $0x98] sm:$0xff] %v1165
      %1198 = vst [vmem:[#allocation9 + $0xa0] sm:$0xff] %v1166
      %1199 = vst [vmem:[#allocation9 + $0xa8] sm:$0xff] %v1167
      %1200 = vst [vmem:[#allocation9 + $0xb0] sm:$0xff] %v1168
      %1201 = vst [vmem:[#allocation9 + $0xb8] sm:$0xff] %v1169
      %1202 = vst [vmem:[#allocation9 + $0xc0] sm:$0xff] %v1170
      %1203 = vst [vmem:[#allocation9 + $0xc8] sm:$0xff] %v1171
      %1204 = vst [vmem:[#allocation9 + $0xd0] sm:$0xff] %v1172
      %1205 = vst [vmem:[#allocation9 + $0xd8] sm:$0xff] %v1173
      %1206 = vst [vmem:[#allocation9 + $0xe0] sm:$0xff] %v1174
      %1207 = vst [vmem:[#allocation9 + $0xe8] sm:$0xff] %v1175
      %1208 = vst [vmem:[#allocation9 + $0xf0] sm:$0xff] %v1176
      %1209 = vst [vmem:[#allocation9 + $0xf8] sm:$0xff] %v1177
    $region41: #{tpu_custom_call.1} parent=1 // pred_fallthru
      _
    // Predicated region
    $region42: #{tpu_custom_call.1} parent=1 // pred_check
      _
    $region43: #{tpu_custom_call.1} parent=1 // pred_check_branch
      %1211 = sbr.rel (0) target = $region45
    $region44: #{tpu_custom_call.1} parent=1 // pred_region
      %s1213 = ssub.s32 4096, 4096
      %1214 = vsyncadd [#allocation5], %s1213
      %s1215 = sshll.u32 [#allocation9], 4
      %s1216 = int_to_ptr.vmem [resolvable:$true] %s1215
      %1221 = dma.vmem_to_hbm [thread:$0]  %s1216, 4096, %s5, [#allocation5], 128, 128, 8
    $region45: #{tpu_custom_call.1} parent=1 // pred_fallthru
      _
    // Predicated region
    $region46: #{tpu_custom_call.1} parent=1 // pred_check
      _
    $region47: #{tpu_custom_call.1} parent=1 // pred_check_branch
      %1223 = sbr.rel (0) target = $region49
    $region48: #{tpu_custom_call.1} parent=1 // pred_region
      %1224 = dma.done [#allocation5], 4096
    $region49: #{tpu_custom_call.1} parent=1 // pred_fallthru
      _
    %1225 = vsyncpa [#allocation4], 1
    %1226 = vsyncpa [#allocation7], 1
    %1227 = vsyncpa [#allocation5], 1

</llo_original>
